<compile_context>
chip_gen: v5e
topology: v5e:2x2
jax: 0.10.0
libtpu: 0.0.40
codegen_flags: <defaults>
</compile_context>

<pallas_src>
import functools

import jax
import jax.numpy as jnp
from jax.experimental import pallas as pl
from jax.experimental.pallas import tpu as pltpu


def _round_up(x, m):
    return (x + m - 1) // m * m


def _dice_partials_kernel(x_ref, t_ref, inter_ref, z_ref, y_ref, *,
                          hw, apply_softmax, need_mask):
    # x_ref     : (C, TILE_N) scores for one batch element / pixel tile (VMEM)
    # t_ref     : (1, TILE_N) integer labels (VMEM)
    # inter_ref : (C, 1) f32 per-batch running intersect  (output accumulator)
    # z_ref     : (C, 1) f32 per-batch running sum(score^2)
    # y_ref     : (C, 1) f32 per-batch running sum(onehot)
    n = pl.program_id(1)

    @pl.when(n == 0)
    def _():
        inter_ref[...] = jnp.zeros_like(inter_ref)
        z_ref[...] = jnp.zeros_like(z_ref)
        y_ref[...] = jnp.zeros_like(y_ref)

    tile_n = x_ref.shape[-1]
    x = x_ref[...].astype(jnp.float32)            # (C, TILE_N)
    labels = t_ref[...]                           # (1, TILE_N)
    if labels.dtype != jnp.int32:
        labels = labels.astype(jnp.int32)

    if apply_softmax:
        # Fused softmax over the class (sublane) axis, per pixel.
        m = jnp.max(x, axis=0, keepdims=True)
        e = jnp.exp(x - m)
        s = jnp.sum(e, axis=0, keepdims=True)
        x = e * pl.reciprocal(s, approx=False)    # 1 recip + C muls, not C divs

    lane_mask = None
    if need_mask:
        col = n * tile_n + jax.lax.broadcasted_iota(jnp.int32, (1, tile_n), 1)
        lane_mask = col < hw                      # (1, TILE_N) bool
        # Zero scores in out-of-range lanes (covers both paths; OOB block data
        # is undefined and softmax turns zeros into 1/C otherwise).
        x = jnp.where(lane_mask, x, jnp.float32(0.0))

    # One compare shared by intersect and y_sum (no float one-hot multiply).
    cls = jax.lax.broadcasted_iota(jnp.int32, x.shape, 0)   # (C, TILE_N)
    match = labels == cls
    if need_mask:
        match = jnp.logical_and(match, lane_mask)

    inter_ref[...] += jnp.sum(jnp.where(match, x, jnp.float32(0.0)),
                              axis=-1, keepdims=True)
    z_ref[...] += jnp.sum(x * x, axis=-1, keepdims=True)
    y_ref[...] += jnp.sum(match.astype(jnp.float32), axis=-1, keepdims=True)


def dice_loss(inputs, target, weight=None, softmax=False,
              vmem_budget_bytes=8 * 1024 * 1024):
    """Pallas equivalent of DiceLoss(n_classes=C).forward(inputs, target, weight, softmax)."""
    B, C, H, W = inputs.shape
    HW = H * W

    x = inputs.reshape(B, C, HW)                  # free reshape, no transpose
    if jnp.issubdtype(target.dtype, jnp.floating):
        t = target.astype(jnp.int32)
    else:
        t = target                                # int8/int16/int32 pass through
    t = t.reshape(B, 1, HW)

    # Lane tile from a VMEM budget: largest 128-multiple such that the
    # double-buffered (scores + labels) tile set stays under budget.
    budget = min(int(vmem_budget_bytes), 24 * 1024 * 1024)
    per_lane = 2 * (C * x.dtype.itemsize + t.dtype.itemsize)
    max_lanes = max(128, (budget // per_lane) // 128 * 128)
    tile_n = min(_round_up(HW, 128), max_lanes)
    num_tiles = (HW + tile_n - 1) // tile_n
    need_mask = (HW % tile_n) != 0

    # Explicit scoped-VMEM limit so the tile choice is portable (v5e default
    # is 16 MiB vs 32 MiB on v6e/v7x).
    vmem_limit = int(min(32 * 1024 * 1024,
                         max(16 * 1024 * 1024, per_lane * tile_n + (4 << 20))))

    kernel = functools.partial(_dice_partials_kernel, hw=HW,
                               apply_softmax=bool(softmax), need_mask=need_mask)

    part = jax.ShapeDtypeStruct((B, C, 1), jnp.float32)
    inter_p, z_p, y_p = pl.pallas_call(
        kernel,
        out_shape=(part, part, part),
        grid_spec=pltpu.PrefetchScalarGridSpec(
            num_scalar_prefetch=0,
            grid=(B, num_tiles),
            in_specs=[
                # (B, C, HW): squeeze batch, full class axis, tiled pixels.
                pl.BlockSpec((None, C, tile_n), lambda b, n: (b, 0, n)),
                # (B, 1, HW): label row for the same tile.
                pl.BlockSpec((None, 1, tile_n), lambda b, n: (b, 0, n)),
            ],
            out_specs=(
                # Per-batch accumulators: block constant across the tile axis.
                pl.BlockSpec((None, C, 1), lambda b, n: (b, 0, 0)),
                pl.BlockSpec((None, C, 1), lambda b, n: (b, 0, 0)),
                pl.BlockSpec((None, C, 1), lambda b, n: (b, 0, 0)),
            ),
        ),
        compiler_params=pltpu.CompilerParams(
            dimension_semantics=("parallel", "arbitrary"),
            vmem_limit_bytes=vmem_limit),
    )(x, t)

    # Tiny finalize in plain JAX: sum partials over batch, dice, weight, mean.
    if weight is None:
        w = jnp.ones((C,), jnp.float32)
    else:
        w = jnp.asarray(weight, jnp.float32).reshape(C)

    inter = jnp.sum(inter_p[:, :, 0], axis=0)     # (C,)
    z = jnp.sum(z_p[:, :, 0], axis=0)
    y = jnp.sum(y_p[:, :, 0], axis=0)
    smooth = jnp.float32(1e-5)
    dice = 1.0 - (2.0 * inter + smooth) / (z + y + smooth)
    return jnp.sum(dice * w) / jnp.float32(C)


def _dice_loss_ref(inputs, target, weight=None, softmax=False):
    """Pure-JAX reference mirroring the PyTorch module exactly."""
    B, C, H, W = inputs.shape
    if softmax:
        inputs = jax.nn.softmax(inputs, axis=1)
    onehot = (target[:, None, :, :] ==
              jnp.arange(C).reshape(1, C, 1, 1)).astype(jnp.float32)
    if weight is None:
        weight = [1.0] * C
    smooth = 1e-5
    loss = 0.0
    for i in range(C):
        s = inputs[:, i].astype(jnp.float32)
        tg = onehot[:, i]
        intersect = jnp.sum(s * tg)
        y_sum = jnp.sum(tg * tg)
        z_sum = jnp.sum(s * s)
        dice = 1.0 - (2.0 * intersect + smooth) / (z_sum + y_sum + smooth)
        loss = loss + dice * weight[i]
    return loss / C


if __name__ == "__main__":
    B, C, H, W = 2, 4, 16, 16
    key = jax.random.PRNGKey(0)
    k1, k2, k3, k4 = jax.random.split(key, 4)

    logits = jax.random.normal(k1, (B, C, H, W), dtype=jnp.float32)
    probs = jax.nn.softmax(logits, axis=1)
    target = jax.random.randint(k2, (B, H, W), minval=0, maxval=C, dtype=jnp.int32)

    # Default path (softmax=False, weight=None), probabilities already given.
    out = jax.block_until_ready(dice_loss(probs, target))
    ref = _dice_loss_ref(probs, target)
    assert jnp.allclose(out, ref, rtol=1e-5, atol=1e-6), (out, ref)

    # Fused-softmax path on raw logits.
    out_sm = jax.block_until_ready(dice_loss(logits, target, softmax=True))
    ref_sm = _dice_loss_ref(logits, target, softmax=True)
    assert jnp.allclose(out_sm, ref_sm, rtol=1e-5, atol=1e-5), (out_sm, ref_sm)

    # Weighted path.
    w_list = [0.5, 1.0, 1.5, 2.0]
    out_w = jax.block_until_ready(dice_loss(probs, target, weight=w_list))
    ref_w = _dice_loss_ref(probs, target, weight=w_list)
    assert jnp.allclose(out_w, ref_w, rtol=1e-5, atol=1e-6), (out_w, ref_w)

    # Ragged tail + non-pow2 class count (exercises the in-kernel lane mask).
    B2, C2, H2, W2 = 2, 3, 10, 10
    logits2 = jax.random.normal(k3, (B2, C2, H2, W2), dtype=jnp.float32)
    target2 = jax.random.randint(k4, (B2, H2, W2), minval=0, maxval=C2,
                                 dtype=jnp.int32)
    out2 = jax.block_until_ready(dice_loss(logits2, target2, softmax=True))
    ref2 = _dice_loss_ref(logits2, target2, softmax=True)
    assert jnp.allclose(out2, ref2, rtol=1e-5, atol=1e-5), (out2, ref2)

    print("KERNEL_OK")
</pallas_src>

<mosaic_0001>
module attributes {stable_mosaic.version = 11 : i64} {
  func.func @_dice_partials_kernel(%arg0: i32, %arg1: i32, %arg2: memref<1x4x256xf32, #tpu.memory_space<vmem>>, %arg3: memref<1x1x256xi32, #tpu.memory_space<vmem>>, %arg4: memref<1x4x1xf32, #tpu.memory_space<vmem>>, %arg5: memref<1x4x1xf32, #tpu.memory_space<vmem>>, %arg6: memref<1x4x1xf32, #tpu.memory_space<vmem>>) attributes {dimension_semantics = [#tpu.dimension_semantics<parallel>, #tpu.dimension_semantics<arbitrary>], iteration_bounds = array<i64: 2, 1>, scalar_prefetch = 0 : i64, scratch_operands = 0 : i64, tpu.core_type = #tpu.core_type<tc>, window_params = [{transform_indices = @transform_0, window_bounds = array<i64: 1, 4, 256>}, {transform_indices = @transform_1, window_bounds = array<i64: 1, 1, 256>}, {transform_indices = @transform_2, window_bounds = array<i64: 1, 4, 1>}, {transform_indices = @transform_3, window_bounds = array<i64: 1, 4, 1>}, {transform_indices = @transform_4, window_bounds = array<i64: 1, 4, 1>}]} {
    %c0_i32 = arith.constant 0 : i32
    %0 = arith.cmpi eq, %arg1, %c0_i32 : i32
    %1 = arith.extui %0 : i1 to i32
    %c0_i32_0 = arith.constant 0 : i32
    %2 = arith.cmpi ne, %1, %c0_i32_0 : i32
    scf.if %2 {
      %cst_27 = arith.constant 0.000000e+00 : f32
      %39 = vector.broadcast %cst_27 : f32 to vector<4x1xf32>
      %c0_28 = arith.constant 0 : index
      %c0_29 = arith.constant 0 : index
      %c0_30 = arith.constant 0 : index
      %40 = vector.load %arg4[%c0_28, %c0_29, %c0_30] : memref<1x4x1xf32, #tpu.memory_space<vmem>>, vector<1x4x1xf32>
      %41 = vector.shape_cast %40 : vector<1x4x1xf32> to vector<4x1xf32>
      %42 = vector.shape_cast %39 : vector<4x1xf32> to vector<1x4x1xf32>
      tpu.vector_store %arg4[%c0_28, %c0_29, %c0_30], %42 {strides = array<i32>} : memref<1x4x1xf32, #tpu.memory_space<vmem>>, vector<1x4x1xf32>,
      %cst_31 = arith.constant 0.000000e+00 : f32
      %43 = vector.broadcast %cst_31 : f32 to vector<4x1xf32>
      %c0_32 = arith.constant 0 : index
      %c0_33 = arith.constant 0 : index
      %c0_34 = arith.constant 0 : index
      %44 = vector.load %arg5[%c0_32, %c0_33, %c0_34] : memref<1x4x1xf32, #tpu.memory_space<vmem>>, vector<1x4x1xf32>
      %45 = vector.shape_cast %44 : vector<1x4x1xf32> to vector<4x1xf32>
      %46 = vector.shape_cast %43 : vector<4x1xf32> to vector<1x4x1xf32>
      tpu.vector_store %arg5[%c0_32, %c0_33, %c0_34], %46 {strides = array<i32>} : memref<1x4x1xf32, #tpu.memory_space<vmem>>, vector<1x4x1xf32>,
      %cst_35 = arith.constant 0.000000e+00 : f32
      %47 = vector.broadcast %cst_35 : f32 to vector<4x1xf32>
      %c0_36 = arith.constant 0 : index
      %c0_37 = arith.constant 0 : index
      %c0_38 = arith.constant 0 : index
      %48 = vector.load %arg6[%c0_36, %c0_37, %c0_38] : memref<1x4x1xf32, #tpu.memory_space<vmem>>, vector<1x4x1xf32>
      %49 = vector.shape_cast %48 : vector<1x4x1xf32> to vector<4x1xf32>
      %50 = vector.shape_cast %47 : vector<4x1xf32> to vector<1x4x1xf32>
      tpu.vector_store %arg6[%c0_36, %c0_37, %c0_38], %50 {strides = array<i32>} : memref<1x4x1xf32, #tpu.memory_space<vmem>>, vector<1x4x1xf32>,
    } else {
    }
    %c0 = arith.constant 0 : index
    %c0_1 = arith.constant 0 : index
    %c0_2 = arith.constant 0 : index
    %3 = vector.load %arg2[%c0, %c0_1, %c0_2] : memref<1x4x256xf32, #tpu.memory_space<vmem>>, vector<1x4x256xf32>
    %4 = vector.shape_cast %3 : vector<1x4x256xf32> to vector<4x256xf32>
    %c0_3 = arith.constant 0 : index
    %c0_4 = arith.constant 0 : index
    %c0_5 = arith.constant 0 : index
    %5 = vector.load %arg3[%c0_3, %c0_4, %c0_5] : memref<1x1x256xi32, #tpu.memory_space<vmem>>, vector<1x1x256xi32>
    %6 = vector.shape_cast %5 : vector<1x1x256xi32> to vector<1x256xi32>
    %7 = tpu.iota {dimensions = array<i32: 0>} : vector<4x256xi32>
    %8 = vector.broadcast %6 : vector<1x256xi32> to vector<4x256xi32>
    %9 = arith.cmpi eq, %8, %7 : vector<4x256xi32>
    %c0_6 = arith.constant 0 : index
    %c0_7 = arith.constant 0 : index
    %c0_8 = arith.constant 0 : index
    %10 = vector.load %arg4[%c0_6, %c0_7, %c0_8] : memref<1x4x1xf32, #tpu.memory_space<vmem>>, vector<1x4x1xf32>
    %11 = vector.shape_cast %10 : vector<1x4x1xf32> to vector<4x1xf32>
    %cst = arith.constant 0.000000e+00 : f32
    %12 = vector.broadcast %cst : f32 to vector<4x256xf32>
    %13 = arith.select %9, %4, %12 : vector<4x256xi1>, vector<4x256xf32>
    %cst_9 = arith.constant dense<0.000000e+00> : vector<4xf32>
    %14 = vector.multi_reduction <add>, %13, %cst_9 [1] : vector<4x256xf32> to vector<4xf32>
    %15 = vector.shape_cast %14 : vector<4xf32> to vector<4x1xf32>
    %16 = arith.addf %11, %15 : vector<4x1xf32>
    %c0_10 = arith.constant 0 : index
    %c0_11 = arith.constant 0 : index
    %c0_12 = arith.constant 0 : index
    %17 = vector.load %arg4[%c0_10, %c0_11, %c0_12] : memref<1x4x1xf32, #tpu.memory_space<vmem>>, vector<1x4x1xf32>
    %18 = vector.shape_cast %17 : vector<1x4x1xf32> to vector<4x1xf32>
    %19 = vector.shape_cast %16 : vector<4x1xf32> to vector<1x4x1xf32>
    tpu.vector_store %arg4[%c0_10, %c0_11, %c0_12], %19 {strides = array<i32>} : memref<1x4x1xf32, #tpu.memory_space<vmem>>, vector<1x4x1xf32>,
    %c0_13 = arith.constant 0 : index
    %c0_14 = arith.constant 0 : index
    %c0_15 = arith.constant 0 : index
    %20 = vector.load %arg5[%c0_13, %c0_14, %c0_15] : memref<1x4x1xf32, #tpu.memory_space<vmem>>, vector<1x4x1xf32>
    %21 = vector.shape_cast %20 : vector<1x4x1xf32> to vector<4x1xf32>
    %22 = arith.mulf %4, %4 : vector<4x256xf32>
    %cst_16 = arith.constant dense<0.000000e+00> : vector<4xf32>
    %23 = vector.multi_reduction <add>, %22, %cst_16 [1] : vector<4x256xf32> to vector<4xf32>
    %24 = vector.shape_cast %23 : vector<4xf32> to vector<4x1xf32>
    %25 = arith.addf %21, %24 : vector<4x1xf32>
    %c0_17 = arith.constant 0 : index
    %c0_18 = arith.constant 0 : index
    %c0_19 = arith.constant 0 : index
    %26 = vector.load %arg5[%c0_17, %c0_18, %c0_19] : memref<1x4x1xf32, #tpu.memory_space<vmem>>, vector<1x4x1xf32>
    %27 = vector.shape_cast %26 : vector<1x4x1xf32> to vector<4x1xf32>
    %28 = vector.shape_cast %25 : vector<4x1xf32> to vector<1x4x1xf32>
    tpu.vector_store %arg5[%c0_17, %c0_18, %c0_19], %28 {strides = array<i32>} : memref<1x4x1xf32, #tpu.memory_space<vmem>>, vector<1x4x1xf32>,
    %c0_20 = arith.constant 0 : index
    %c0_21 = arith.constant 0 : index
    %c0_22 = arith.constant 0 : index
    %29 = vector.load %arg6[%c0_20, %c0_21, %c0_22] : memref<1x4x1xf32, #tpu.memory_space<vmem>>, vector<1x4x1xf32>
    %30 = vector.shape_cast %29 : vector<1x4x1xf32> to vector<4x1xf32>
    %31 = arith.extui %9 : vector<4x256xi1> to vector<4x256xi32>
    %32 = arith.sitofp %31 : vector<4x256xi32> to vector<4x256xf32>
    %cst_23 = arith.constant dense<0.000000e+00> : vector<4xf32>
    %33 = vector.multi_reduction <add>, %32, %cst_23 [1] : vector<4x256xf32> to vector<4xf32>
    %34 = vector.shape_cast %33 : vector<4xf32> to vector<4x1xf32>
    %35 = arith.addf %30, %34 : vector<4x1xf32>
    %c0_24 = arith.constant 0 : index
    %c0_25 = arith.constant 0 : index
    %c0_26 = arith.constant 0 : index
    %36 = vector.load %arg6[%c0_24, %c0_25, %c0_26] : memref<1x4x1xf32, #tpu.memory_space<vmem>>, vector<1x4x1xf32>
    %37 = vector.shape_cast %36 : vector<1x4x1xf32> to vector<4x1xf32>
    %38 = vector.shape_cast %35 : vector<4x1xf32> to vector<1x4x1xf32>
    tpu.vector_store %arg6[%c0_24, %c0_25, %c0_26], %38 {strides = array<i32>} : memref<1x4x1xf32, #tpu.memory_space<vmem>>, vector<1x4x1xf32>,
    return
  }
  func.func @transform_0(%arg0: i32, %arg1: i32) -> (i32, i32, i32) {
    %c0_i32 = arith.constant 0 : i32
    %c0_i32_0 = arith.constant 0 : i32
    return %arg0, %c0_i32, %arg1 : i32, i32, i32
  }
  func.func @transform_1(%arg0: i32, %arg1: i32) -> (i32, i32, i32) {
    %c0_i32 = arith.constant 0 : i32
    %c0_i32_0 = arith.constant 0 : i32
    return %arg0, %c0_i32, %arg1 : i32, i32, i32
  }
  func.func @transform_2(%arg0: i32, %arg1: i32) -> (i32, i32, i32) {
    %c0_i32 = arith.constant 0 : i32
    %c0_i32_0 = arith.constant 0 : i32
    %c0_i32_1 = arith.constant 0 : i32
    return %arg0, %c0_i32, %c0_i32_0 : i32, i32, i32
  }
  func.func @transform_3(%arg0: i32, %arg1: i32) -> (i32, i32, i32) {
    %c0_i32 = arith.constant 0 : i32
    %c0_i32_0 = arith.constant 0 : i32
    %c0_i32_1 = arith.constant 0 : i32
    return %arg0, %c0_i32, %c0_i32_0 : i32, i32, i32
  }
  func.func @transform_4(%arg0: i32, %arg1: i32) -> (i32, i32, i32) {
    %c0_i32 = arith.constant 0 : i32
    %c0_i32_0 = arith.constant 0 : i32
    %c0_i32_1 = arith.constant 0 : i32
    return %arg0, %c0_i32, %c0_i32_0 : i32, i32, i32
  }
}

</mosaic_0001>

<llo_original>
// kernel: tpu_custom_call.1
$region0: #{tpu_custom_call.1}
  #allocation0 [shape = 'u32[]', space=smem, size = 0x4, offset = 0x4, fixed_abs, tag = 'smem constant byte address 0x4 - core index']
  #allocation1 [shape = 'u32[72,128]{1,0:T(1,128)}', space=vmem, size = 0x9000, scoped, tag = 'internal scratch']
  %s0 = inlined_call_operand.hbm [shape: f32[2,4,256], index: 0, kind: input, shape index: {}]
  %s1 = inlined_call_operand.hbm [shape: s32[2,1,256], index: 1, kind: input, shape index: {}]
  %s2 = inlined_call_operand.vmem [shape: f32[2,4,1], index: 2, kind: output, shape index: {0}]
  %s3 = inlined_call_operand.vmem [shape: f32[2,4,1], index: 3, kind: output, shape index: {1}]
  %s4 = inlined_call_operand.vmem [shape: f32[2,4,1], index: 4, kind: output, shape index: {2}]
  %5 = xla_tuple %s2, %s3, %s4
  %s6 = sld [smem:[#allocation0]]
  $region69: #{tpu_custom_call.1} parent=0
    _
  %s8 = ssub.s32 1, %s6
  %s9 = scalar_select 0, %s8, %s6
  $region1: #{tpu_custom_call.1} parent=0
    #allocation2 [shape = 'u8[8192]{0}', space=vmem, size = 0x2000, scoped, tag = 'input window, operand 0']
    #allocation3 [shape = 's32[2]{0}', space=sflag, size = 0x8, scoped, tag = 'scoped memory for tpu_custom_call.1']
    #allocation4 [shape = 'u8[2048]{0}', space=vmem, size = 0x800, scoped, tag = 'input window, operand 1']
    #allocation5 [shape = 's32[2]{0}', space=sflag, size = 0x8, scoped, tag = 'scoped memory for tpu_custom_call.1']
    %10 = vsyncpa [#allocation3], 0
    %s11 = scalar_lea.sflag [#allocation3], 1
    %12 = vsyncpa %s11, 0
    %13 = vsyncpa [#allocation5], 0
    %s14 = scalar_lea.sflag [#allocation5], 1
    %15 = vsyncpa %s14, 0
    loop: start=0, step=1, limit=4
    $region2: #{tpu_custom_call.1} parent=1 // loop_pre_header
      _
    $region3: #{tpu_custom_call.1} parent=1 // loop_header
      %s17 = sphi 0, %s21
      %p18 = scmp.ge.s32.totalorder %s17, 4
      %s24 = sphi 0, %s36
      %s25 = sphi 0, %s32
      %s26 = sphi 0, %s24
      %s27 = sphi 0, %s25
      %s28 = sphi 0, %s26
      %s29 = sphi 0, %s27
      %s41 = sphi 0, %s43
      %s44 = sphi 0, %s41
      %s45 = sphi 0, %s44
      %s61 = sphi 0, %s45
      %s69 = sphi 0, %s71
      %s72 = sphi 0, %s69
      %s73 = sphi 0, %s72
      %s89 = sphi 0, %s73
      %s95 = sphi 0, %s97
      %s98 = sphi 0, %s95
      %s99 = sphi 0, %s98
      %s115 = sphi 0, %s99
      %s121 = sphi 0, %s123
      %s124 = sphi 0, %s121
      %s125 = sphi 0, %s124
      %s141 = sphi 0, %s125
      %s147 = sphi 0, %s149
      %s150 = sphi 0, %s147
      %s151 = sphi 0, %s150
      %s167 = sphi 0, %s151
    $region4: #{tpu_custom_call.1} parent=1 // loop_header_branch
      %20 = sbr.rel (%p18) target = $region8
    $region5: #{tpu_custom_call.1} parent=1 // loop_body
      %s22 = ssub.s32 %s17, 1
      %s23 = ssub.s32 %s17, 2
      %s30 = sadd.s32 1, %s25
      %p31 = scmp.ge.s32.totalorder %s30, 1
      %s32 = scalar_select %p31, 0, %s30
      %s33 = sadd.s32 1, %s24
      %s34 = scalar_select %p31, %s33, %s24
      %p35 = scmp.ge.s32.totalorder %s34, 2
      %s36 = scalar_select %p35, 0, %s34
      %s37 = ssub.s32 %s24, %s36
      %s38 = ssub.s32 %s25, %s32
      %s39 = sor.u32 %s37, %s38
      %p40 = scmp.eq.s32.totalorder %s39, 0
      %s42 = sadd.s32 %s41, 1
      %s43 = scalar_select %p40, %s41, %s42
      %p46 = pneg %p40
      %p47 = scmp.eq.s32.totalorder %s17, 1
      %p48 = por %p46, %p47
      %p49 = scmp.ne.s32.totalorder %s41, %s44
      %p50 = scmp.eq.s32.totalorder %s17, 0
      %p51 = por %p49, %p50
      %p52 = scmp.ne.s32.totalorder %s41, %s44
      %p53 = scmp.eq.s32.totalorder %s22, 1
      %p54 = por %p52, %p53
      %p55 = scmp.ne.s32.totalorder %s44, %s45
      %p56 = scmp.eq.s32.totalorder %s22, 0
      %p57 = por %p55, %p56
      %p58 = scmp.ne.s32.totalorder %s44, %s45
      %p59 = scmp.eq.s32.totalorder %s23, 1
      %p60 = por %p58, %p59
      %p62 = scmp.ne.s32.totalorder %s45, %s61
      %p63 = scmp.eq.s32.totalorder %s23, 0
      %p64 = por %p62, %p63
      %s65 = ssub.s32 %s24, %s36
      %s66 = ssub.s32 %s25, %s32
      %s67 = sor.u32 %s65, %s66
      %p68 = scmp.eq.s32.totalorder %s67, 0
      %s70 = sadd.s32 %s69, 1
      %s71 = scalar_select %p68, %s69, %s70
      %p74 = pneg %p68
      %p75 = scmp.eq.s32.totalorder %s17, 1
      %p76 = por %p74, %p75
      %p77 = scmp.ne.s32.totalorder %s69, %s72
      %p78 = scmp.eq.s32.totalorder %s17, 0
      %p79 = por %p77, %p78
      %p80 = scmp.ne.s32.totalorder %s69, %s72
      %p81 = scmp.eq.s32.totalorder %s22, 1
      %p82 = por %p80, %p81
      %p83 = scmp.ne.s32.totalorder %s72, %s73
      %p84 = scmp.eq.s32.totalorder %s22, 0
      %p85 = por %p83, %p84
      %p86 = scmp.ne.s32.totalorder %s72, %s73
      %p87 = scmp.eq.s32.totalorder %s23, 1
      %p88 = por %p86, %p87
      %p90 = scmp.ne.s32.totalorder %s73, %s89
      %p91 = scmp.eq.s32.totalorder %s23, 0
      %p92 = por %p90, %p91
      %s93 = ssub.s32 %s24, %s36
      %p94 = scmp.eq.s32.totalorder %s93, 0
      %s96 = sadd.s32 %s95, 1
      %s97 = scalar_select %p94, %s95, %s96
      %p100 = pneg %p94
      %p101 = scmp.eq.s32.totalorder %s17, 1
      %p102 = por %p100, %p101
      %p103 = scmp.ne.s32.totalorder %s95, %s98
      %p104 = scmp.eq.s32.totalorder %s17, 0
      %p105 = por %p103, %p104
      %p106 = scmp.ne.s32.totalorder %s95, %s98
      %p107 = scmp.eq.s32.totalorder %s22, 1
      %p108 = por %p106, %p107
      %p109 = scmp.ne.s32.totalorder %s98, %s99
      %p110 = scmp.eq.s32.totalorder %s22, 0
      %p111 = por %p109, %p110
      %p112 = scmp.ne.s32.totalorder %s98, %s99
      %p113 = scmp.eq.s32.totalorder %s23, 1
      %p114 = por %p112, %p113
      %p116 = scmp.ne.s32.totalorder %s99, %s115
      %p117 = scmp.eq.s32.totalorder %s23, 0
      %p118 = por %p116, %p117
      %s119 = ssub.s32 %s24, %s36
      %p120 = scmp.eq.s32.totalorder %s119, 0
      %s122 = sadd.s32 %s121, 1
      %s123 = scalar_select %p120, %s121, %s122
      %p126 = pneg %p120
      %p127 = scmp.eq.s32.totalorder %s17, 1
      %p128 = por %p126, %p127
      %p129 = scmp.ne.s32.totalorder %s121, %s124
      %p130 = scmp.eq.s32.totalorder %s17, 0
      %p131 = por %p129, %p130
      %p132 = scmp.ne.s32.totalorder %s121, %s124
      %p133 = scmp.eq.s32.totalorder %s22, 1
      %p134 = por %p132, %p133
      %p135 = scmp.ne.s32.totalorder %s124, %s125
      %p136 = scmp.eq.s32.totalorder %s22, 0
      %p137 = por %p135, %p136
      %p138 = scmp.ne.s32.totalorder %s124, %s125
      %p139 = scmp.eq.s32.totalorder %s23, 1
      %p140 = por %p138, %p139
      %p142 = scmp.ne.s32.totalorder %s125, %s141
      %p143 = scmp.eq.s32.totalorder %s23, 0
      %p144 = por %p142, %p143
      %s145 = ssub.s32 %s24, %s36
      %p146 = scmp.eq.s32.totalorder %s145, 0
      %s148 = sadd.s32 %s147, 1
      %s149 = scalar_select %p146, %s147, %s148
      %p152 = pneg %p146
      %p153 = scmp.eq.s32.totalorder %s17, 1
      %p154 = por %p152, %p153
      %p155 = scmp.ne.s32.totalorder %s147, %s150
      %p156 = scmp.eq.s32.totalorder %s17, 0
      %p157 = por %p155, %p156
      %p158 = scmp.ne.s32.totalorder %s147, %s150
      %p159 = scmp.eq.s32.totalorder %s22, 1
      %p160 = por %p158, %p159
      %p161 = scmp.ne.s32.totalorder %s150, %s151
      %p162 = scmp.eq.s32.totalorder %s22, 0
      %p163 = por %p161, %p162
      %p164 = scmp.ne.s32.totalorder %s150, %s151
      %p165 = scmp.eq.s32.totalorder %s23, 1
      %p166 = por %p164, %p165
      %p168 = scmp.ne.s32.totalorder %s151, %s167
      %p169 = scmp.eq.s32.totalorder %s23, 0
      %p170 = por %p168, %p169
      %p171 = scmp.le.s32.totalorder 1, %s17
      %p172 = scmp.lt.s32.totalorder %s17, 3
      %p173 = pnand %p171, %p172
      %p174 = pneg %p173
      // Predicated region
      $region9: #{tpu_custom_call.1} parent=5 // pred_check
        _
      $region10: #{tpu_custom_call.1} parent=5 // pred_check_branch
        %176 = sbr.rel (%p173) target = $region12
      $region11: #{tpu_custom_call.1} parent=5 // pred_region
        %s177 = ssub.s32 %s17, 1
      $region12: #{tpu_custom_call.1} parent=5 // pred_fallthru
        _
      %p178 = scmp.lt.s32.totalorder %s17, 2
      // Predicated region
      $region13: #{tpu_custom_call.1} parent=5 // pred_check
        %p179 = pneg %p178
      $region14: #{tpu_custom_call.1} parent=5 // pred_check_branch
        %181 = sbr.rel (%p179) target = $region16
      $region15: #{tpu_custom_call.1} parent=5 // pred_region
        // Predicated region
        $region17: #{tpu_custom_call.1} parent=15 // pred_check
          %p182 = pneg %p51
        $region18: #{tpu_custom_call.1} parent=15 // pred_check_branch
          %184 = sbr.rel (%p182) target = $region20
        $region19: #{tpu_custom_call.1} parent=15 // pred_region
          %s185 = sand.u32 %s41, 1
          %s186 = scalar_lea.sflag [#allocation3], %s185
          %s187 = sand.u32 %s41, 1
          %s188 = smul.addr %s187, 8
          %s189 = scalar_lea.vmem [#allocation2], %s188
          %s190 = smul.u32 2, %s25
          %192 = vsyncadd %s186, 0
          %s193 = smul.addr %s24, 2
          %s194 = sadd.s32 %s190, %s193
          %s195 = smul.addr %s194, 4
          %s196 = scalar_lea.hbm %s0, %s195
          %s198 = sshll.u32 %s196, 4
          %s199 = int_to_ptr.hbm [resolvable:$true] %s198
          %s200 = sshll.u32 %s189, 4
          %s201 = int_to_ptr.vmem [resolvable:$true] %s200
          %203 = dma.hbm_to_vmem [thread:$0]  %s199, 128, %s201, %s186
        $region20: #{tpu_custom_call.1} parent=15 // pred_fallthru
          _
        // Predicated region
        $region21: #{tpu_custom_call.1} parent=15 // pred_check
          %p204 = pneg %p79
        $region22: #{tpu_custom_call.1} parent=15 // pred_check_branch
          %206 = sbr.rel (%p204) target = $region24
        $region23: #{tpu_custom_call.1} parent=15 // pred_region
          %s207 = sand.u32 %s69, 1
          %s208 = scalar_lea.sflag [#allocation5], %s207
          %s209 = sand.u32 %s69, 1
          %s210 = smul.addr %s209, 2
          %s211 = scalar_lea.vmem [#allocation4], %s210
          %s212 = smul.u32 2, %s25
          %214 = vsyncadd %s208, 0
          %s215 = smul.addr %s24, 2
          %s216 = sadd.s32 %s212, %s215
          %s217 = scalar_lea.hbm %s1, %s216
          %s219 = sshll.u32 %s217, 4
          %s220 = int_to_ptr.hbm [resolvable:$true] %s219
          %s221 = sshll.u32 %s211, 4
          %s222 = int_to_ptr.vmem [resolvable:$true] %s221
          %224 = dma.hbm_to_vmem [thread:$0]  %s220, 32, %s222, %s208
        $region24: #{tpu_custom_call.1} parent=15 // pred_fallthru
          _
      $region16: #{tpu_custom_call.1} parent=5 // pred_fallthru
        _
      %p225 = scmp.le.s32.totalorder 1, %s17
      %p226 = scmp.lt.s32.totalorder %s17, 3
      %p227 = pnand %p225, %p226
      %p228 = pneg %p227
      // Predicated region
      $region25: #{tpu_custom_call.1} parent=5 // pred_check
        _
      $region26: #{tpu_custom_call.1} parent=5 // pred_check_branch
        %230 = sbr.rel (%p227) target = $region28
      $region27: #{tpu_custom_call.1} parent=5 // pred_region
        %s231 = ssub.s32 %s17, 1
        %s232 = sand.u32 %s44, 1
        %s233 = scalar_lea.sflag [#allocation3], %s232
        %s234 = sand.u32 %s44, 1
        %s235 = smul.addr %s234, 8
        %s236 = scalar_lea.vmem [#allocation2], %s235
        // Predicated region
        $region29: #{tpu_custom_call.1} parent=27 // pred_check
          %p237 = pneg %p57
        $region30: #{tpu_custom_call.1} parent=27 // pred_check_branch
          %239 = sbr.rel (%p237) target = $region32
        $region31: #{tpu_custom_call.1} parent=27 // pred_region
          %241 = dma.done %s233, 128
        $region32: #{tpu_custom_call.1} parent=27 // pred_fallthru
          _
        %s242 = sand.u32 %s72, 1
        %s243 = scalar_lea.sflag [#allocation5], %s242
        %s244 = sand.u32 %s72, 1
        %s245 = smul.addr %s244, 2
        %s246 = scalar_lea.vmem [#allocation4], %s245
        // Predicated region
        $region33: #{tpu_custom_call.1} parent=27 // pred_check
          %p247 = pneg %p85
        $region34: #{tpu_custom_call.1} parent=27 // pred_check_branch
          %249 = sbr.rel (%p247) target = $region36
        $region35: #{tpu_custom_call.1} parent=27 // pred_region
          %251 = dma.done %s243, 32
        $region36: #{tpu_custom_call.1} parent=27 // pred_fallthru
          _
        %s252 = sand.u32 %s44, 1
        %s253 = scalar_lea.sflag [#allocation3], %s252
        %s254 = sand.u32 %s44, 1
        %s255 = smul.addr %s254, 8
        %s256 = scalar_lea.vmem [#allocation2], %s255
        %p257 = pneg %p57
        %p258 = pneg %p54
        %s259 = sand.u32 %s72, 1
        %s260 = scalar_lea.sflag [#allocation5], %s259
        %s261 = sand.u32 %s72, 1
        %s262 = smul.addr %s261, 2
        %s263 = scalar_lea.vmem [#allocation4], %s262
        %p264 = pneg %p85
        %p265 = pneg %p82
        %p266 = pneg %p111
        %p267 = pneg %p108
        %p268 = scmp.lt.s32.totalorder %s26, 1
        %s269 = scalar_select %p268, %s26, 1
        %s270 = smul.addr %s269, 4
        %s271 = scalar_lea.vmem %s2, %s270
        %p272 = pneg %p137
        %p273 = pneg %p134
        %p274 = scmp.lt.s32.totalorder %s26, 1
        %s275 = scalar_select %p274, %s26, 1
        %s276 = smul.addr %s275, 4
        %s277 = scalar_lea.vmem %s3, %s276
        %p278 = pneg %p163
        %p279 = pneg %p160
        %p280 = scmp.lt.s32.totalorder %s26, 1
        %s281 = scalar_select %p280, %s26, 1
        %s282 = smul.addr %s281, 4
        %s283 = scalar_lea.vmem %s4, %s282
        %s284 = smul.u32 2, %s27
        %s285 = smul.u32 2, %s27
        %p286 = scmp.lt.s32.totalorder %s26, 1
        %s287 = scalar_select %p286, %s26, 1
        %s288 = smul.addr %s287, 4
        %s289 = scalar_lea.vmem %s2, %s288
        %p290 = scmp.lt.s32.totalorder %s26, 1
        %s291 = scalar_select %p290, %s26, 1
        %s292 = smul.addr %s291, 4
        %s293 = scalar_lea.vmem %s3, %s292
        %p294 = scmp.lt.s32.totalorder %s26, 1
        %s295 = scalar_select %p294, %s26, 1
        %s296 = smul.addr %s295, 4
        %s297 = scalar_lea.vmem %s4, %s296
        %p298 = scmp.eq.s32.totalorder %s27, 0
        // Predicated region
        $region37: #{tpu_custom_call.1} parent=27 // pred_check
          %p299 = pneg %p298
        $region38: #{tpu_custom_call.1} parent=27 // pred_check_branch
          %301 = sbr.rel (%p299) target = $region40
        $region39: #{tpu_custom_call.1} parent=27 // pred_region
          %vm302 = vcmask 3072
          %303 = vst.msk [vmem:[%s289] sm:$0xf] %vm302, 0.0
          %304 = vst.msk [vmem:[%s293] sm:$0xf] %vm302, 0.0
          %305 = vst.msk [vmem:[%s297] sm:$0xf] %vm302, 0.0
        $region40: #{tpu_custom_call.1} parent=27 // pred_fallthru
          _
        %v306 = vld [vmem:[%s236] sm:$0xff]
        %v307 = vld [vmem:[%s246] sm:$0x3]
        %v308 = vlaneseq
        %v309 = vshrl.u32 %v308, 7
        %v310 = vperm.slane %v307, 0
        %v311 = vperm.slane %v307, 1
        %vm312 = vcmp.eq.s32.totalorder %v310, %v309
        %vm313 = vcmp.eq.s32.totalorder %v311, %v309
        %v314 = vld [vmem:[%s289] sm:$0xf]
        %316 = vst [vmem:[#allocation1] ss:$2 sm:$0xff] %v306
        %v317 = vld.sshfl [vmem:[#allocation1] sm:$0xff pattern:$0x75316420]
        %v318 = vld.sshfl [vmem:[#allocation1 + $0x8] sm:$0xff pattern:$0x75316420]
        %v321 = vsel %vm312, %v317, 0.0
        %v322 = vsel %vm313, %v318, 0.0
        %vm323 = vcmask 1043456
        %v324 = vsel %vm323, %v321, 0.0
        %v325 = vsel %vm323, %v322, 0.0
        %v326 = vadd.f32 %v324, %v325
        %327 = vadd.xlane.f32.xlu0 %v326
        %v328 = vpop.xlane.xlu0 %327
        %v329 = vadd.f32 %v314, %v328
        %vm330 = vcmask 3072
        %331 = vst.msk [vmem:[%s289] sm:$0xf] %vm330, %v329
        %v332 = vld [vmem:[%s293] sm:$0xf]
        %v333 = vmul.f32 %v306, %v306
        %335 = vst [vmem:[#allocation1] ss:$2 sm:$0xff] %v333
        %v336 = vld.sshfl [vmem:[#allocation1] sm:$0xff pattern:$0x75316420]
        %v337 = vld.sshfl [vmem:[#allocation1 + $0x8] sm:$0xff pattern:$0x75316420]
        %v340 = vsel %vm323, %v336, 0.0
        %v341 = vsel %vm323, %v337, 0.0
        %v342 = vadd.f32 %v340, %v341
        %343 = vadd.xlane.f32.xlu0 %v342
        %v344 = vpop.xlane.xlu0 %343
        %v345 = vadd.f32 %v332, %v344
        %346 = vst.msk [vmem:[%s293] sm:$0xf] %vm330, %v345
        %v347 = vld [vmem:[%s297] sm:$0xf]
        %v348 = vsel %vm312, 1, 0
        %v349 = vsel %vm313, 1, 0
        %v350 = vcvt.s32.f32 %v348
        %v351 = vcvt.s32.f32 %v349
        %v352 = vsel %vm323, %v350, 0.0
        %v353 = vsel %vm323, %v351, 0.0
        %v354 = vadd.f32 %v352, %v353
        %355 = vadd.xlane.f32.xlu0 %v354
        %v356 = vpop.xlane.xlu0 %355
        %v357 = vadd.f32 %v347, %v356
        %358 = vst.msk [vmem:[%s297] sm:$0xf] %vm330, %v357
        %p359 = scmp.lt.s32.totalorder %s26, 1
        %s360 = scalar_select %p359, %s26, 1
        %s361 = smul.addr %s360, 4
        %s362 = scalar_lea.vmem %s2, %s361
        %p363 = scmp.lt.s32.totalorder %s26, 1
        %s364 = scalar_select %p363, %s26, 1
        %s365 = smul.addr %s364, 4
        %s366 = scalar_lea.vmem %s3, %s365
        %p367 = scmp.lt.s32.totalorder %s26, 1
        %s368 = scalar_select %p367, %s26, 1
        %s369 = smul.addr %s368, 4
        %s370 = scalar_lea.vmem %s4, %s369
        // Predicated region
        $region41: #{tpu_custom_call.1} parent=27 // pred_check
          %p371 = pneg %p108
        $region42: #{tpu_custom_call.1} parent=27 // pred_check_branch
          %373 = sbr.rel (%p371) target = $region44
        $region43: #{tpu_custom_call.1} parent=27 // pred_region
          _
        $region44: #{tpu_custom_call.1} parent=27 // pred_fallthru
          _
        // Predicated region
        $region45: #{tpu_custom_call.1} parent=27 // pred_check
          %p374 = pneg %p134
        $region46: #{tpu_custom_call.1} parent=27 // pred_check_branch
          %376 = sbr.rel (%p374) target = $region48
        $region47: #{tpu_custom_call.1} parent=27 // pred_region
          _
        $region48: #{tpu_custom_call.1} parent=27 // pred_fallthru
          _
        // Predicated region
        $region49: #{tpu_custom_call.1} parent=27 // pred_check
          %p377 = pneg %p160
        $region50: #{tpu_custom_call.1} parent=27 // pred_check_branch
          %379 = sbr.rel (%p377) target = $region52
        $region51: #{tpu_custom_call.1} parent=27 // pred_region
          _
        $region52: #{tpu_custom_call.1} parent=27 // pred_fallthru
          _
      $region28: #{tpu_custom_call.1} parent=5 // pred_fallthru
        _
      %p380 = scmp.le.s32.totalorder 2, %s17
      // Predicated region
      $region53: #{tpu_custom_call.1} parent=5 // pred_check
        %p381 = pneg %p380
      $region54: #{tpu_custom_call.1} parent=5 // pred_check_branch
        %383 = sbr.rel (%p381) target = $region56
      $region55: #{tpu_custom_call.1} parent=5 // pred_region
        %s384 = ssub.s32 %s17, 2
        // Predicated region
        $region57: #{tpu_custom_call.1} parent=55 // pred_check
          %p385 = pneg %p114
        $region58: #{tpu_custom_call.1} parent=55 // pred_check_branch
          %387 = sbr.rel (%p385) target = $region60
        $region59: #{tpu_custom_call.1} parent=55 // pred_region
          %p388 = scmp.lt.s32.totalorder %s28, 1
          %s389 = scalar_select %p388, %s28, 1
          %s390 = smul.addr %s389, 4
          %s391 = scalar_lea.vmem %s2, %s390
        $region60: #{tpu_custom_call.1} parent=55 // pred_fallthru
          _
        // Predicated region
        $region61: #{tpu_custom_call.1} parent=55 // pred_check
          %p392 = pneg %p140
        $region62: #{tpu_custom_call.1} parent=55 // pred_check_branch
          %394 = sbr.rel (%p392) target = $region64
        $region63: #{tpu_custom_call.1} parent=55 // pred_region
          %p395 = scmp.lt.s32.totalorder %s28, 1
          %s396 = scalar_select %p395, %s28, 1
          %s397 = smul.addr %s396, 4
          %s398 = scalar_lea.vmem %s3, %s397
        $region64: #{tpu_custom_call.1} parent=55 // pred_fallthru
          _
        // Predicated region
        $region65: #{tpu_custom_call.1} parent=55 // pred_check
          %p399 = pneg %p166
        $region66: #{tpu_custom_call.1} parent=55 // pred_check_branch
          %401 = sbr.rel (%p399) target = $region68
        $region67: #{tpu_custom_call.1} parent=55 // pred_region
          %p402 = scmp.lt.s32.totalorder %s28, 1
          %s403 = scalar_select %p402, %s28, 1
          %s404 = smul.addr %s403, 4
          %s405 = scalar_lea.vmem %s4, %s404
        $region68: #{tpu_custom_call.1} parent=55 // pred_fallthru
          _
      $region56: #{tpu_custom_call.1} parent=5 // pred_fallthru
        _
    $region6: #{tpu_custom_call.1} parent=1 // loop_footer
      %s21 = sadd.s32 1, %s17
    $region7: #{tpu_custom_call.1} parent=1 // loop_footer_branch
      %16 = sbr.rel target = $region3
    $region8: #{tpu_custom_call.1} parent=1 // loop_exit
      _
    %406 = vsyncpa [#allocation3], 1
    %s407 = scalar_lea.sflag [#allocation3], 1
    %408 = vsyncpa %s407, 1
    %409 = vsyncpa [#allocation5], 1
    %s410 = scalar_lea.sflag [#allocation5], 1
    %411 = vsyncpa %s410, 1

</llo_original>
